<compile_context>
chip_gen: v5e
topology: v5e:2x2
jax: 0.10.0
libtpu: 0.0.40
codegen_flags: <defaults>
</compile_context>

<pallas_src>
import functools

import jax
import jax.numpy as jnp
from jax.experimental import pallas as pl
from jax.experimental.pallas import tpu as pltpu

_LANE = 128
_SUBLANE = 8
_ROW_ALIGN = 16            # block-row granularity; covers f32 (8) and bf16 (16)
_MAX_ROWS_PER_TILE = 2048  # (2048,128) f32 block = 1 MiB per input per step
_NUM_SHARDS = 2            # v7x has 2 TensorCores; degrades gracefully elsewhere


def _mse_mae_kernel(x_ref, y_ref, o_ref, *, valid_rows, tiles_per_shard):
    # x_ref, y_ref : (rows_per_tile, 128) blocks in the inputs' native dtype
    # o_ref        : (8, 128) f32 per-shard accumulator (resident across axis 1)
    c = pl.program_id(0)   # shard (parallel; one per TensorCore on v7x)
    i = pl.program_id(1)   # row-tile within shard (reduction axis)

    @pl.when(i == 0)
    def _():
        o_ref[...] = jnp.zeros_like(o_ref)

    rows_per_tile = x_ref.shape[0]

    # Unclamped global tile index -> mask rows that fall outside the real array
    # (partial boundary blocks and clamped/duplicated trailing shard tiles).
    tile_idx = c * tiles_per_shard + i
    row_ids = tile_idx * rows_per_tile + jax.lax.broadcasted_iota(
        jnp.int32, (rows_per_tile, _LANE), 0)
    mask = row_ids < valid_rows

    x = x_ref[...].astype(jnp.float32)
    y = y_ref[...].astype(jnp.float32)
    d = jnp.where(mask, x - y, 0.0)
    contrib = d * d + jnp.abs(d)                      # fused MSE + L1 terms

    # Fold the tile into one (8,128) vreg of per-(sublane, lane) partial sums;
    # the cross-sublane/lane reduce happens once, in the wrapper.
    o_ref[...] += jnp.sum(
        contrib.reshape(rows_per_tile // _SUBLANE, _SUBLANE, _LANE), axis=0)


def custom_loss(reconstructed, target):
    """CustomLoss.forward: MSE(reconstructed, target) + L1(reconstructed, target)."""
    assert reconstructed.shape == target.shape
    n = int(reconstructed.size)

    x = reconstructed.reshape(-1)   # contiguous flatten: metadata-only
    y = target.reshape(-1)

    rem = n % _LANE
    if rem:
        # Only for numel not a multiple of 128: minimal zero pad (<128 elems) so
        # a lane-dense (rows, 128) view exists. Zero pads contribute nothing.
        # TODO(synk): fully pad-free ragged tail would need 1-D/manual-DMA blocks.
        x = jnp.pad(x, (0, _LANE - rem))
        y = jnp.pad(y, (0, _LANE - rem))

    rows = x.size // _LANE
    x2 = x.reshape(rows, _LANE)     # zero-copy for contiguous row-major data
    y2 = y.reshape(rows, _LANE)

    rows_per_tile = min(_MAX_ROWS_PER_TILE, pl.cdiv(rows, _ROW_ALIGN) * _ROW_ALIGN)
    num_row_blocks = pl.cdiv(rows, rows_per_tile)
    tiles_per_shard = pl.cdiv(num_row_blocks, _NUM_SHARDS)

    def in_map(c, i):
        # Clamp so a shard's trailing (empty) tiles re-read a valid block; their
        # contribution is masked to zero inside the kernel.
        t = jnp.minimum(c * tiles_per_shard + i, num_row_blocks - 1)
        return (t, 0)

    kernel = functools.partial(
        _mse_mae_kernel, valid_rows=rows, tiles_per_shard=tiles_per_shard)

    partials = pl.pallas_call(
        kernel,
        out_shape=jax.ShapeDtypeStruct((_NUM_SHARDS * _SUBLANE, _LANE), jnp.float32),
        grid=(_NUM_SHARDS, tiles_per_shard),
        in_specs=[
            pl.BlockSpec((rows_per_tile, _LANE), in_map),
            pl.BlockSpec((rows_per_tile, _LANE), in_map),
        ],
        out_specs=pl.BlockSpec((_SUBLANE, _LANE), lambda c, i: (c, 0)),
        compiler_params=pltpu.CompilerParams(
            dimension_semantics=("parallel", "arbitrary")),
    )(x2, y2)

    # mean(d^2) + mean(|d|) == (sum(d^2) + sum(|d|)) / n  (shared divisor)
    return jnp.sum(partials) * (1.0 / n)


def _reference_loss(r, t):
    d = r.astype(jnp.float32) - t.astype(jnp.float32)
    return jnp.mean(d * d) + jnp.mean(jnp.abs(d))


if __name__ == "__main__":
    key = jax.random.PRNGKey(0)
    loss_fn = jax.jit(custom_loss)

    # Primary small-shape test consistent with the module's forward.
    k1, k2 = jax.random.split(key)
    shape = (2, 4, 16, 16)
    reconstructed = jax.random.normal(k1, shape, jnp.float32)
    target = jax.random.normal(k2, shape, jnp.float32)

    loss = loss_fn(reconstructed, target)
    jax.block_until_ready(loss)
    ref = _reference_loss(reconstructed, target)
    assert loss.shape == () and bool(jnp.isfinite(loss))
    assert jnp.allclose(loss, ref, rtol=1e-5, atol=1e-5), (float(loss), float(ref))

    # Multi-tile accumulation path (grid axis 1 > 1) with native bf16 streaming.
    k3, k4 = jax.random.split(k2)
    r2 = jax.random.normal(k3, (4, 8, 256, 256), jnp.bfloat16)
    t2 = jax.random.normal(k4, (4, 8, 256, 256), jnp.bfloat16)
    loss2 = loss_fn(r2, t2)
    jax.block_until_ready(loss2)
    assert jnp.allclose(loss2, _reference_loss(r2, t2), rtol=1e-4, atol=1e-4)

    # Ragged path (numel not a multiple of 128) exercising in-kernel masking.
    k5, k6 = jax.random.split(k4)
    r3 = jax.random.normal(k5, (2, 3, 5, 7), jnp.float32)
    t3 = jax.random.normal(k6, (2, 3, 5, 7), jnp.float32)
    loss3 = loss_fn(r3, t3)
    jax.block_until_ready(loss3)
    assert jnp.allclose(loss3, _reference_loss(r3, t3), rtol=1e-5, atol=1e-5)

    print("KERNEL_OK")
</pallas_src>

<mosaic_0001>
module attributes {stable_mosaic.version = 11 : i64} {
  func.func @_mse_mae_kernel(%arg0: i32, %arg1: i32, %arg2: memref<16x128xf32, #tpu.memory_space<vmem>>, %arg3: memref<16x128xf32, #tpu.memory_space<vmem>>, %arg4: memref<8x128xf32, #tpu.memory_space<vmem>>) attributes {dimension_semantics = [#tpu.dimension_semantics<parallel>, #tpu.dimension_semantics<arbitrary>], iteration_bounds = array<i64: 2, 1>, scalar_prefetch = 0 : i64, scratch_operands = 0 : i64, tpu.core_type = #tpu.core_type<tc>, window_params = [{transform_indices = @transform_0, window_bounds = array<i64: 16, 128>}, {transform_indices = @transform_1, window_bounds = array<i64: 16, 128>}, {transform_indices = @transform_2, window_bounds = array<i64: 8, 128>}]} {
    %c0_i32 = arith.constant 0 : i32
    %0 = arith.cmpi eq, %arg1, %c0_i32 : i32
    %1 = arith.extui %0 : i1 to i32
    %c0_i32_0 = arith.constant 0 : i32
    %2 = arith.cmpi ne, %1, %c0_i32_0 : i32
    scf.if %2 {
      %cst_10 = arith.constant 0.000000e+00 : f32
      %24 = vector.broadcast %cst_10 : f32 to vector<8x128xf32>
      %c0_11 = arith.constant 0 : index
      %c0_12 = arith.constant 0 : index
      %25 = vector.load %arg4[%c0_11, %c0_12] : memref<8x128xf32, #tpu.memory_space<vmem>>, vector<8x128xf32>
      tpu.vector_store %arg4[%c0_11, %c0_12], %24 {strides = array<i32>} : memref<8x128xf32, #tpu.memory_space<vmem>>, vector<8x128xf32>,
    } else {
    }
    %c1_i32 = arith.constant 1 : i32
    %3 = arith.muli %arg0, %c1_i32 : i32
    %4 = arith.addi %3, %arg1 : i32
    %c16_i32 = arith.constant 16 : i32
    %5 = arith.muli %4, %c16_i32 : i32
    %6 = tpu.iota {dimensions = array<i32: 0>} : vector<16x128xi32>
    %7 = vector.broadcast %5 : i32 to vector<16x128xi32>
    %8 = arith.addi %7, %6 : vector<16x128xi32>
    %c16_i32_1 = arith.constant 16 : i32
    %9 = vector.broadcast %c16_i32_1 : i32 to vector<16x128xi32>
    %10 = arith.cmpi slt, %8, %9 : vector<16x128xi32>
    %c0 = arith.constant 0 : index
    %c0_2 = arith.constant 0 : index
    %11 = vector.load %arg2[%c0, %c0_2] : memref<16x128xf32, #tpu.memory_space<vmem>>, vector<16x128xf32>
    %c0_3 = arith.constant 0 : index
    %c0_4 = arith.constant 0 : index
    %12 = vector.load %arg3[%c0_3, %c0_4] : memref<16x128xf32, #tpu.memory_space<vmem>>, vector<16x128xf32>
    %13 = arith.subf %11, %12 : vector<16x128xf32>
    %cst = arith.constant 0.000000e+00 : f32
    %14 = vector.broadcast %cst : f32 to vector<16x128xf32>
    %15 = arith.select %10, %13, %14 : vector<16x128xi1>, vector<16x128xf32>
    %16 = arith.mulf %15, %15 : vector<16x128xf32>
    %17 = math.absf %15 : vector<16x128xf32>
    %18 = arith.addf %16, %17 : vector<16x128xf32>
    %c0_5 = arith.constant 0 : index
    %c0_6 = arith.constant 0 : index
    %19 = vector.load %arg4[%c0_5, %c0_6] : memref<8x128xf32, #tpu.memory_space<vmem>>, vector<8x128xf32>
    %20 = vector.shape_cast %18 : vector<16x128xf32> to vector<2x8x128xf32>
    %cst_7 = arith.constant dense<0.000000e+00> : vector<8x128xf32>
    %21 = vector.multi_reduction <add>, %20, %cst_7 [0] : vector<2x8x128xf32> to vector<8x128xf32>
    %22 = arith.addf %19, %21 : vector<8x128xf32>
    %c0_8 = arith.constant 0 : index
    %c0_9 = arith.constant 0 : index
    %23 = vector.load %arg4[%c0_8, %c0_9] : memref<8x128xf32, #tpu.memory_space<vmem>>, vector<8x128xf32>
    tpu.vector_store %arg4[%c0_8, %c0_9], %22 {strides = array<i32>} : memref<8x128xf32, #tpu.memory_space<vmem>>, vector<8x128xf32>,
    return
  }
  func.func @transform_0(%arg0: i32, %arg1: i32) -> (i32, i32) {
    %c1_i32 = arith.constant 1 : i32
    %0 = arith.muli %arg0, %c1_i32 : i32
    %1 = arith.addi %0, %arg1 : i32
    %c0_i32 = arith.constant 0 : i32
    %2 = arith.minsi %1, %c0_i32 : i32
    %c0_i32_0 = arith.constant 0 : i32
    %c0_i32_1 = arith.constant 0 : i32
    return %2, %c0_i32_0 : i32, i32
  }
  func.func @transform_1(%arg0: i32, %arg1: i32) -> (i32, i32) {
    %c1_i32 = arith.constant 1 : i32
    %0 = arith.muli %arg0, %c1_i32 : i32
    %1 = arith.addi %0, %arg1 : i32
    %c0_i32 = arith.constant 0 : i32
    %2 = arith.minsi %1, %c0_i32 : i32
    %c0_i32_0 = arith.constant 0 : i32
    %c0_i32_1 = arith.constant 0 : i32
    return %2, %c0_i32_0 : i32, i32
  }
  func.func @transform_2(%arg0: i32, %arg1: i32) -> (i32, i32) {
    %c0_i32 = arith.constant 0 : i32
    %c0_i32_0 = arith.constant 0 : i32
    return %arg0, %c0_i32 : i32, i32
  }
}

</mosaic_0001>

<llo_original>
// kernel: custom_loss.1
$region0: #{custom_loss.1}
  #allocation0 [shape = 'u32[]', space=smem, size = 0x4, offset = 0x4, fixed_abs, tag = 'smem constant byte address 0x4 - core index']
  #allocation1 [shape = 'u32[72,128]{1,0:T(1,128)}', space=vmem, size = 0x9000, scoped, tag = 'internal scratch']
  %s0 = inlined_call_operand.vmem [shape: f32[16,128], index: 0, kind: input, shape index: {}]
  %s1 = inlined_call_operand.vmem [shape: f32[16,128], index: 1, kind: input, shape index: {}]
  %s2 = inlined_call_operand.vmem [shape: f32[16,128], index: 2, kind: output, shape index: {}]
  %s3 = sld [smem:[#allocation0]]
  $region45: #{custom_loss.1} parent=0
    _
  %s5 = ssub.s32 1, %s3
  %s6 = scalar_select 0, %s5, %s3
  loop: start=0, step=1, limit=4
  $region2: #{custom_loss.1} parent=0 // loop_pre_header
    _
  $region3: #{custom_loss.1} parent=0 // loop_header
    %s8 = sphi 0, %s12
    %p9 = scmp.ge.s32.totalorder %s8, 4
    %s15 = sphi 0, %s27
    %s16 = sphi 0, %s23
    %s17 = sphi 0, %s15
    %s18 = sphi 0, %s16
    %s19 = sphi 0, %s17
    %s20 = sphi 0, %s18
    %s36 = sphi 0, %s38
    %s39 = sphi 0, %s36
    %s40 = sphi 0, %s39
    %s56 = sphi 0, %s40
    %s68 = sphi 0, %s70
    %s71 = sphi 0, %s68
    %s72 = sphi 0, %s71
    %s88 = sphi 0, %s72
    %s94 = sphi 0, %s96
    %s97 = sphi 0, %s94
    %s98 = sphi 0, %s97
    %s114 = sphi 0, %s98
  $region4: #{custom_loss.1} parent=0 // loop_header_branch
    %11 = sbr.rel (%p9) target = $region8
  $region5: #{custom_loss.1} parent=0 // loop_body
    %s13 = ssub.s32 %s8, 1
    %s14 = ssub.s32 %s8, 2
    %s21 = sadd.s32 1, %s16
    %p22 = scmp.ge.s32.totalorder %s21, 1
    %s23 = scalar_select %p22, 0, %s21
    %s24 = sadd.s32 1, %s15
    %s25 = scalar_select %p22, %s24, %s15
    %p26 = scmp.ge.s32.totalorder %s25, 2
    %s27 = scalar_select %p26, 0, %s25
    %s28 = sadd.s32 %s15, %s16
    %p29 = scmp.lt.s32.totalorder %s28, 0
    %s30 = scalar_select %p29, %s28, 0
    %s31 = sadd.s32 %s27, %s23
    %p32 = scmp.lt.s32.totalorder %s31, 0
    %s33 = scalar_select %p32, %s31, 0
    %s34 = ssub.s32 %s30, %s33
    %p35 = scmp.eq.s32.totalorder %s34, 0
    %s37 = sadd.s32 %s36, 1
    %s38 = scalar_select %p35, %s36, %s37
    %p41 = pneg %p35
    %p42 = scmp.eq.s32.totalorder %s8, 1
    %p43 = por %p41, %p42
    %p44 = scmp.ne.s32.totalorder %s36, %s39
    %p45 = scmp.eq.s32.totalorder %s8, 0
    %p46 = por %p44, %p45
    %p47 = scmp.ne.s32.totalorder %s36, %s39
    %p48 = scmp.eq.s32.totalorder %s13, 1
    %p49 = por %p47, %p48
    %p50 = scmp.ne.s32.totalorder %s39, %s40
    %p51 = scmp.eq.s32.totalorder %s13, 0
    %p52 = por %p50, %p51
    %p53 = scmp.ne.s32.totalorder %s39, %s40
    %p54 = scmp.eq.s32.totalorder %s14, 1
    %p55 = por %p53, %p54
    %p57 = scmp.ne.s32.totalorder %s40, %s56
    %p58 = scmp.eq.s32.totalorder %s14, 0
    %p59 = por %p57, %p58
    %s60 = sadd.s32 %s15, %s16
    %p61 = scmp.lt.s32.totalorder %s60, 0
    %s62 = scalar_select %p61, %s60, 0
    %s63 = sadd.s32 %s27, %s23
    %p64 = scmp.lt.s32.totalorder %s63, 0
    %s65 = scalar_select %p64, %s63, 0
    %s66 = ssub.s32 %s62, %s65
    %p67 = scmp.eq.s32.totalorder %s66, 0
    %s69 = sadd.s32 %s68, 1
    %s70 = scalar_select %p67, %s68, %s69
    %p73 = pneg %p67
    %p74 = scmp.eq.s32.totalorder %s8, 1
    %p75 = por %p73, %p74
    %p76 = scmp.ne.s32.totalorder %s68, %s71
    %p77 = scmp.eq.s32.totalorder %s8, 0
    %p78 = por %p76, %p77
    %p79 = scmp.ne.s32.totalorder %s68, %s71
    %p80 = scmp.eq.s32.totalorder %s13, 1
    %p81 = por %p79, %p80
    %p82 = scmp.ne.s32.totalorder %s71, %s72
    %p83 = scmp.eq.s32.totalorder %s13, 0
    %p84 = por %p82, %p83
    %p85 = scmp.ne.s32.totalorder %s71, %s72
    %p86 = scmp.eq.s32.totalorder %s14, 1
    %p87 = por %p85, %p86
    %p89 = scmp.ne.s32.totalorder %s72, %s88
    %p90 = scmp.eq.s32.totalorder %s14, 0
    %p91 = por %p89, %p90
    %s92 = ssub.s32 %s15, %s27
    %p93 = scmp.eq.s32.totalorder %s92, 0
    %s95 = sadd.s32 %s94, 1
    %s96 = scalar_select %p93, %s94, %s95
    %p99 = pneg %p93
    %p100 = scmp.eq.s32.totalorder %s8, 1
    %p101 = por %p99, %p100
    %p102 = scmp.ne.s32.totalorder %s94, %s97
    %p103 = scmp.eq.s32.totalorder %s8, 0
    %p104 = por %p102, %p103
    %p105 = scmp.ne.s32.totalorder %s94, %s97
    %p106 = scmp.eq.s32.totalorder %s13, 1
    %p107 = por %p105, %p106
    %p108 = scmp.ne.s32.totalorder %s97, %s98
    %p109 = scmp.eq.s32.totalorder %s13, 0
    %p110 = por %p108, %p109
    %p111 = scmp.ne.s32.totalorder %s97, %s98
    %p112 = scmp.eq.s32.totalorder %s14, 1
    %p113 = por %p111, %p112
    %p115 = scmp.ne.s32.totalorder %s98, %s114
    %p116 = scmp.eq.s32.totalorder %s14, 0
    %p117 = por %p115, %p116
    %p118 = scmp.le.s32.totalorder 1, %s8
    %p119 = scmp.lt.s32.totalorder %s8, 3
    %p120 = pnand %p118, %p119
    %p121 = pneg %p120
    // Predicated region
    $region9: #{custom_loss.1} parent=5 // pred_check
      _
    $region10: #{custom_loss.1} parent=5 // pred_check_branch
      %123 = sbr.rel (%p120) target = $region12
    $region11: #{custom_loss.1} parent=5 // pred_region
      %s124 = ssub.s32 %s8, 1
    $region12: #{custom_loss.1} parent=5 // pred_fallthru
      _
    %p125 = scmp.lt.s32.totalorder %s8, 2
    // Predicated region
    $region13: #{custom_loss.1} parent=5 // pred_check
      %p126 = pneg %p125
    $region14: #{custom_loss.1} parent=5 // pred_check_branch
      %128 = sbr.rel (%p126) target = $region16
    $region15: #{custom_loss.1} parent=5 // pred_region
      // Predicated region
      $region17: #{custom_loss.1} parent=15 // pred_check
        %p129 = pneg %p46
      $region18: #{custom_loss.1} parent=15 // pred_check_branch
        %131 = sbr.rel (%p129) target = $region20
      $region19: #{custom_loss.1} parent=15 // pred_region
        %s132 = sadd.s32 %s15, %s16
        %p133 = scmp.lt.s32.totalorder %s132, 0
        %s134 = scalar_select %p133, %s132, 0
        %s135 = smul.u32 2, %s134
        %p136 = scmp.lt.s32.totalorder %s135, 1
        %s137 = scalar_select %p136, %s135, 1
        %s138 = smul.addr %s137, 8
        %s139 = scalar_lea.vmem %s0, %s138
        %s140 = sadd.s32 %s15, %s16
        %p141 = scmp.lt.s32.totalorder %s140, 0
        %s142 = scalar_select %p141, %s140, 0
        %s143 = smul.u32 2, %s142
      $region20: #{custom_loss.1} parent=15 // pred_fallthru
        _
      // Predicated region
      $region21: #{custom_loss.1} parent=15 // pred_check
        %p144 = pneg %p78
      $region22: #{custom_loss.1} parent=15 // pred_check_branch
        %146 = sbr.rel (%p144) target = $region24
      $region23: #{custom_loss.1} parent=15 // pred_region
        %s147 = sadd.s32 %s15, %s16
        %p148 = scmp.lt.s32.totalorder %s147, 0
        %s149 = scalar_select %p148, %s147, 0
        %s150 = smul.u32 2, %s149
        %p151 = scmp.lt.s32.totalorder %s150, 1
        %s152 = scalar_select %p151, %s150, 1
        %s153 = smul.addr %s152, 8
        %s154 = scalar_lea.vmem %s1, %s153
        %s155 = sadd.s32 %s15, %s16
        %p156 = scmp.lt.s32.totalorder %s155, 0
        %s157 = scalar_select %p156, %s155, 0
        %s158 = smul.u32 2, %s157
      $region24: #{custom_loss.1} parent=15 // pred_fallthru
        _
    $region16: #{custom_loss.1} parent=5 // pred_fallthru
      _
    %p159 = scmp.le.s32.totalorder 1, %s8
    %p160 = scmp.lt.s32.totalorder %s8, 3
    %p161 = pnand %p159, %p160
    %p162 = pneg %p161
    // Predicated region
    $region25: #{custom_loss.1} parent=5 // pred_check
      _
    $region26: #{custom_loss.1} parent=5 // pred_check_branch
      %164 = sbr.rel (%p161) target = $region28
    $region27: #{custom_loss.1} parent=5 // pred_region
      %s165 = ssub.s32 %s8, 1
      %s166 = sadd.s32 %s17, %s18
      %p167 = scmp.lt.s32.totalorder %s166, 0
      %s168 = scalar_select %p167, %s166, 0
      %s169 = smul.u32 2, %s168
      %p170 = scmp.lt.s32.totalorder %s169, 1
      %s171 = scalar_select %p170, %s169, 1
      %s172 = smul.addr %s171, 8
      %s173 = scalar_lea.vmem %s0, %s172
      %p174 = pneg %p52
      %p175 = pneg %p49
      %s176 = sadd.s32 %s17, %s18
      %p177 = scmp.lt.s32.totalorder %s176, 0
      %s178 = scalar_select %p177, %s176, 0
      %s179 = smul.u32 2, %s178
      %p180 = scmp.lt.s32.totalorder %s179, 1
      %s181 = scalar_select %p180, %s179, 1
      %s182 = smul.addr %s181, 8
      %s183 = scalar_lea.vmem %s1, %s182
      %p184 = pneg %p84
      %p185 = pneg %p81
      %p186 = pneg %p110
      %p187 = pneg %p107
      %p188 = scmp.lt.s32.totalorder %s17, 1
      %s189 = scalar_select %p188, %s17, 1
      %s190 = smul.addr %s189, 8
      %s191 = scalar_lea.vmem %s2, %s190
      %s192 = sadd.s32 %s17, %s18
      %p193 = scmp.lt.s32.totalorder %s192, 0
      %s194 = scalar_select %p193, %s192, 0
      %s195 = smul.u32 2, %s194
      %p196 = scmp.lt.s32.totalorder %s195, 1
      %s197 = scalar_select %p196, %s195, 1
      %s198 = smul.addr %s197, 8
      %s199 = scalar_lea.vmem %s0, %s198
      %s200 = sadd.s32 %s17, %s18
      %p201 = scmp.lt.s32.totalorder %s200, 0
      %s202 = scalar_select %p201, %s200, 0
      %s203 = smul.u32 2, %s202
      %s204 = sadd.s32 %s17, %s18
      %p205 = scmp.lt.s32.totalorder %s204, 0
      %s206 = scalar_select %p205, %s204, 0
      %s207 = smul.u32 2, %s206
      %p208 = scmp.lt.s32.totalorder %s207, 1
      %s209 = scalar_select %p208, %s207, 1
      %s210 = smul.addr %s209, 8
      %s211 = scalar_lea.vmem %s1, %s210
      %s212 = sadd.s32 %s17, %s18
      %p213 = scmp.lt.s32.totalorder %s212, 0
      %s214 = scalar_select %p213, %s212, 0
      %s215 = smul.u32 2, %s214
      %p216 = scmp.lt.s32.totalorder %s17, 1
      %s217 = scalar_select %p216, %s17, 1
      %s218 = smul.addr %s217, 8
      %s219 = scalar_lea.vmem %s2, %s218
      %p220 = scmp.eq.s32.totalorder %s18, 0
      // Predicated region
      $region29: #{custom_loss.1} parent=27 // pred_check
        %p221 = pneg %p220
      $region30: #{custom_loss.1} parent=27 // pred_check_branch
        %223 = sbr.rel (%p221) target = $region32
      $region31: #{custom_loss.1} parent=27 // pred_region
        %224 = vst [vmem:[%s219] sm:$0xff] 0.0
      $region32: #{custom_loss.1} parent=27 // pred_fallthru
        _
      %s225 = sadd.s32 %s17, %s18
      %s226 = smul.u32 %s225, 16
      %v227 = vlaneseq
      %v228 = vshrl.u32 %v227, 7
      %v229 = vadd.s32 %v228, 8
      %v230 = vstv %s226
      %v231 = vadd.s32 %v230, %v228
      %v232 = vadd.s32 %v230, %v229
      %vm233 = vcmp.lt.s32.totalorder %v231, 16
      %vm234 = vcmp.lt.s32.totalorder %v232, 16
      %v235 = vld [vmem:[%s199] sm:$0xff]
      %v236 = vld [vmem:[%s199 + $0x8] sm:$0xff]
      %v237 = vld [vmem:[%s211] sm:$0xff]
      %v238 = vld [vmem:[%s211 + $0x8] sm:$0xff]
      %v239 = vsub.f32 %v235, %v237
      %v240 = vsub.f32 %v236, %v238
      %v241 = vsel %vm233, %v239, 0.0
      %v242 = vsel %vm234, %v240, 0.0
      %v243 = vmul.f32 %v241, %v241
      %v244 = vmul.f32 %v242, %v242
      %v245 = vand.u32 2147483647, %v241
      %v246 = vand.u32 2147483647, %v242
      %v247 = vadd.f32 %v243, %v245
      %v248 = vadd.f32 %v244, %v246
      %v249 = vld [vmem:[%s219] sm:$0xff]
      %v250 = vadd.f32 %v247, %v248
      %v251 = vadd.f32 %v249, %v250
      %252 = vst [vmem:[%s219] sm:$0xff] %v251
      %p253 = scmp.lt.s32.totalorder %s17, 1
      %s254 = scalar_select %p253, %s17, 1
      %s255 = smul.addr %s254, 8
      %s256 = scalar_lea.vmem %s2, %s255
      // Predicated region
      $region33: #{custom_loss.1} parent=27 // pred_check
        %p257 = pneg %p107
      $region34: #{custom_loss.1} parent=27 // pred_check_branch
        %259 = sbr.rel (%p257) target = $region36
      $region35: #{custom_loss.1} parent=27 // pred_region
        _
      $region36: #{custom_loss.1} parent=27 // pred_fallthru
        _
    $region28: #{custom_loss.1} parent=5 // pred_fallthru
      _
    %p260 = scmp.le.s32.totalorder 2, %s8
    // Predicated region
    $region37: #{custom_loss.1} parent=5 // pred_check
      %p261 = pneg %p260
    $region38: #{custom_loss.1} parent=5 // pred_check_branch
      %263 = sbr.rel (%p261) target = $region40
    $region39: #{custom_loss.1} parent=5 // pred_region
      %s264 = ssub.s32 %s8, 2
      // Predicated region
      $region41: #{custom_loss.1} parent=39 // pred_check
        %p265 = pneg %p113
      $region42: #{custom_loss.1} parent=39 // pred_check_branch
        %267 = sbr.rel (%p265) target = $region44
      $region43: #{custom_loss.1} parent=39 // pred_region
        %p268 = scmp.lt.s32.totalorder %s19, 1
        %s269 = scalar_select %p268, %s19, 1
        %s270 = smul.addr %s269, 8
        %s271 = scalar_lea.vmem %s2, %s270
      $region44: #{custom_loss.1} parent=39 // pred_fallthru
        _
    $region40: #{custom_loss.1} parent=5 // pred_fallthru
      _
  $region6: #{custom_loss.1} parent=0 // loop_footer
    %s12 = sadd.s32 1, %s8
  $region7: #{custom_loss.1} parent=0 // loop_footer_branch
    %7 = sbr.rel target = $region3
  $region8: #{custom_loss.1} parent=0 // loop_exit
    _

</llo_original>
